<compile_context>
chip_gen: v7x
topology: tpu7x:2x2x1
jax: 0.10.0
libtpu: 0.0.40
codegen_flags: <defaults>
</compile_context>

<pallas_src>
import functools

import jax
import jax.numpy as jnp
from jax import lax
from jax.experimental import pallas as pl
from jax.experimental.pallas import tpu as pltpu

H1, H2, OUT = 16, 8, 1
_SUBLANE = 8
_LANE = 128
_DEFAULT_TILE_B = 16384  # batch rows per grid step

# Contract the last dim of both operands: A[m,k] . B[n,k] -> [m,n]  (A @ B^T).
_NT_DIMS = (((1,), (1,)), ((), ()))


def _round_up(n, m):
    return ((n + m - 1) // m) * m


def _mlp_kernel(x_ref, w1_ref, b1_ref, w2_ref, b2_ref, w3_ref, b3_ref, o_ref):
    # x tile arrives in its native [TB, D] layout (batch on sublanes).  Feed the MXU
    # bf16 operands; accumulate in f32; keep all VPU/EUP math in f32 (v5e-safe).
    xb = x_ref[...].astype(jnp.bfloat16)

    # fc1 + ReLU: contract D on both sides -> lane-dense [16, TB].
    h1 = lax.dot_general(w1_ref[...], xb, _NT_DIMS,
                         preferred_element_type=jnp.float32)
    h1 = jnp.maximum(h1 + b1_ref[...], 0.0)
    # dropout1: identity (eval mode)

    # fc2 + ReLU -> [8, TB]
    h2 = jnp.dot(w2_ref[...], h1.astype(jnp.bfloat16),
                 preferred_element_type=jnp.float32)
    h2 = jnp.maximum(h2 + b2_ref[...], 0.0)
    # dropout2: identity (eval mode)

    # fc3 + Sigmoid -> [1, TB]; exact sigmoid keeps outputs in [0, 1].
    z = jnp.dot(w3_ref[...], h2.astype(jnp.bfloat16),
                preferred_element_type=jnp.float32) + b3_ref[...]
    o_ref[0] = 1.0 / (1.0 + jnp.exp(-z))   # unmasked full-lane-width store


@functools.partial(jax.jit, static_argnames=("tile_b",))
def supervised_net_forward(x, params, *, tile_b=_DEFAULT_TILE_B):
    """x: [B, input_dim] f32.  params: PyTorch-layout weights w[out,in], biases b[out,1]."""
    x = x.astype(jnp.float32)
    B, D = x.shape

    # Tile count: >=2 and even when the batch is big enough, so the "parallel" batch
    # axis shards across both v7x TensorCores.  tb is rounded up to the 8-row sublane
    # granule (tail padding <8 rows/tile); the ragged last block is masked by Pallas.
    num_tiles = pl.cdiv(B, tile_b)
    if B >= 2 * _LANE:
        num_tiles = max(num_tiles, 2)
    if num_tiles > 1 and num_tiles % 2:
        num_tiles += 1
    tb = _round_up(pl.cdiv(B, num_tiles), _SUBLANE)
    num_tiles = pl.cdiv(B, tb)   # drop tiles that rounding made fully empty

    # Tiny one-time cast: bf16 weights keep the MXU in single-pass mode.
    w1 = params["w1"].astype(jnp.bfloat16)
    w2 = params["w2"].astype(jnp.bfloat16)
    w3 = params["w3"].astype(jnp.bfloat16)
    b1, b2, b3 = params["b1"], params["b2"], params["b3"]

    # Weights/biases: constant block index -> DMA'd once, stay VMEM-resident.
    resident = lambda a: pl.BlockSpec(a.shape, lambda i: (0, 0))

    flops = 2 * B * (D * H1 + H1 * H2 + H2 * OUT)
    bytes_accessed = B * D * 4 + num_tiles * tb * 4

    out = pl.pallas_call(
        _mlp_kernel,
        out_shape=jax.ShapeDtypeStruct((num_tiles, 1, tb), jnp.float32),
        grid=(num_tiles,),
        in_specs=[
            pl.BlockSpec((tb, D), lambda i: (i, 0)),   # x tile, double-buffered
            resident(w1), resident(b1),
            resident(w2), resident(b2),
            resident(w3), resident(b3),
        ],
        out_specs=pl.BlockSpec((1, 1, tb), lambda i: (i, 0, 0)),
        compiler_params=pltpu.CompilerParams(
            dimension_semantics=("parallel",),          # 2 TensorCores on v7x
            vmem_limit_bytes=32 * 1024 * 1024),
        cost_estimate=pl.CostEstimate(flops=flops, transcendentals=B,
                                      bytes_accessed=bytes_accessed),
    )(x, w1, b1, w2, b2, w3, b3)

    # Back to the module's [B, 1] output; reshape is a free row-major view, the slice
    # only copies B*4 bytes (drops the <8-row-per-tile tail padding).
    return out.reshape(num_tiles * tb, 1)[:B]


def _q(a):
    """bf16 quantization matching the kernel's MXU operand precision."""
    return a.astype(jnp.bfloat16).astype(jnp.float32)


def supervised_net_reference(x, params):
    """Pure-JAX reference applying the same bf16 operand quantization as the kernel."""
    h1 = jnp.maximum(_q(x) @ _q(params["w1"]).T + params["b1"].T, 0.0)
    h2 = jnp.maximum(_q(h1) @ _q(params["w2"]).T + params["b2"].T, 0.0)
    z = _q(h2) @ _q(params["w3"]).T + params["b3"].T
    return jax.nn.sigmoid(z)


def init_params(key, input_dim):
    """Mimics nn.Linear's uniform(-1/sqrt(fan_in), 1/sqrt(fan_in)).
    Weights kept in PyTorch layout [out, in]; biases as [out, 1]."""
    def linear(k, fan_in, fan_out):
        kw, kb = jax.random.split(k)
        bound = 1.0 / jnp.sqrt(float(fan_in))
        w = jax.random.uniform(kw, (fan_out, fan_in), jnp.float32, -bound, bound)
        b = jax.random.uniform(kb, (fan_out, 1), jnp.float32, -bound, bound)
        return w, b

    k1, k2, k3 = jax.random.split(key, 3)
    w1, b1 = linear(k1, input_dim, H1)
    w2, b2 = linear(k2, H1, H2)
    w3, b3 = linear(k3, H2, OUT)
    return {"w1": w1, "b1": b1, "w2": w2, "b2": b2, "w3": w3, "b3": b3}


if __name__ == "__main__":
    key = jax.random.PRNGKey(0)
    k_x, k_x2, k_x3, k_p = jax.random.split(key, 4)

    input_dim = 32
    params = init_params(k_p, input_dim)

    # Small batch: single exact tile (tb == B), no padding at all.
    x = jax.random.normal(k_x, (8, input_dim), jnp.float32)
    out = supervised_net_forward(x, params)
    jax.block_until_ready(out)
    assert out.shape == (8, 1)
    assert bool(jnp.all((out >= 0.0) & (out <= 1.0 + 1e-6)))
    ref = supervised_net_reference(x, params)
    assert bool(jnp.allclose(out, ref, atol=2e-3, rtol=2e-3))

    # Batch that is not a tile multiple: multi-tile grid + ragged (masked) last block.
    x2 = jax.random.normal(k_x2, (260, input_dim), jnp.float32)
    out2 = supervised_net_forward(x2, params, tile_b=128)
    jax.block_until_ready(out2)
    assert out2.shape == (260, 1)
    ref2 = supervised_net_reference(x2, params)
    assert bool(jnp.allclose(out2, ref2, atol=2e-3, rtol=2e-3))

    # Exact multiple: even tile count (megacore-friendly), no ragged block.
    x3 = jax.random.normal(k_x3, (512, input_dim), jnp.float32)
    out3 = supervised_net_forward(x3, params, tile_b=128)
    jax.block_until_ready(out3)
    assert out3.shape == (512, 1)
    ref3 = supervised_net_reference(x3, params)
    assert bool(jnp.allclose(out3, ref3, atol=2e-3, rtol=2e-3))

    print("KERNEL_OK")
</pallas_src>

<mosaic_0001>
module attributes {stable_mosaic.version = 11 : i64} {
  func.func @_mlp_kernel(%arg0: i32, %arg1: memref<8x32xf32, #tpu.memory_space<vmem>>, %arg2: memref<16x32xbf16, #tpu.memory_space<vmem>>, %arg3: memref<16x1xf32, #tpu.memory_space<vmem>>, %arg4: memref<8x16xbf16, #tpu.memory_space<vmem>>, %arg5: memref<8x1xf32, #tpu.memory_space<vmem>>, %arg6: memref<1x8xbf16, #tpu.memory_space<vmem>>, %arg7: memref<1x1xf32, #tpu.memory_space<vmem>>, %arg8: memref<1x1x8xf32, #tpu.memory_space<vmem>>) attributes {dimension_semantics = [#tpu.dimension_semantics<parallel>], iteration_bounds = array<i64: 1>, scalar_prefetch = 0 : i64, scratch_operands = 0 : i64, tpu.core_type = #tpu.core_type<tc>, window_params = [{transform_indices = @transform_0, window_bounds = array<i64: 8, 32>}, {pipeline_mode = #tpu.pipeline_mode<synchronous>, transform_indices = @transform_1, window_bounds = array<i64: 16, 32>}, {pipeline_mode = #tpu.pipeline_mode<synchronous>, transform_indices = @transform_2, window_bounds = array<i64: 16, 1>}, {pipeline_mode = #tpu.pipeline_mode<synchronous>, transform_indices = @transform_3, window_bounds = array<i64: 8, 16>}, {pipeline_mode = #tpu.pipeline_mode<synchronous>, transform_indices = @transform_4, window_bounds = array<i64: 8, 1>}, {pipeline_mode = #tpu.pipeline_mode<synchronous>, transform_indices = @transform_5, window_bounds = array<i64: 1, 8>}, {pipeline_mode = #tpu.pipeline_mode<synchronous>, transform_indices = @transform_6, window_bounds = array<i64: 1, 1>}, {transform_indices = @transform_7, window_bounds = array<i64: 1, 1, 8>}]} {
    %c0 = arith.constant 0 : index
    %c0_0 = arith.constant 0 : index
    %0 = vector.load %arg1[%c0, %c0_0] : memref<8x32xf32, #tpu.memory_space<vmem>>, vector<8x32xf32>
    %1 = arith.truncf %0 : vector<8x32xf32> to vector<8x32xbf16>
    %c0_1 = arith.constant 0 : index
    %c0_2 = arith.constant 0 : index
    %2 = vector.load %arg2[%c0_1, %c0_2] : memref<16x32xbf16, #tpu.memory_space<vmem>>, vector<16x32xbf16>
    %cst = arith.constant dense<0.000000e+00> : vector<16x8xf32>
    %3 = tpu.matmul %2, %1, %cst {dimension_numbers = #tpu.dot_dimension_numbers<[1], [1], [0], [0], [0, 0, 1, 0], [], []>} : vector<16x32xbf16>, vector<8x32xbf16>, vector<16x8xf32> -> vector<16x8xf32>
    %c0_3 = arith.constant 0 : index
    %c0_4 = arith.constant 0 : index
    %4 = vector.load %arg3[%c0_3, %c0_4] : memref<16x1xf32, #tpu.memory_space<vmem>>, vector<16x1xf32>
    %5 = vector.broadcast %4 : vector<16x1xf32> to vector<16x8xf32>
    %6 = arith.addf %3, %5 : vector<16x8xf32>
    %cst_5 = arith.constant 0.000000e+00 : f32
    %7 = vector.broadcast %cst_5 : f32 to vector<16x8xf32>
    %8 = arith.maximumf %6, %7 : vector<16x8xf32>
    %c0_6 = arith.constant 0 : index
    %c0_7 = arith.constant 0 : index
    %9 = vector.load %arg4[%c0_6, %c0_7] : memref<8x16xbf16, #tpu.memory_space<vmem>>, vector<8x16xbf16>
    %10 = arith.truncf %8 : vector<16x8xf32> to vector<16x8xbf16>
    %cst_8 = arith.constant dense<0.000000e+00> : vector<8x8xf32>
    %11 = tpu.matmul %9, %10, %cst_8 {dimension_numbers = #tpu.dot_dimension_numbers<[1], [0], [0], [1], [0, 0, 1, 1], [], []>} : vector<8x16xbf16>, vector<16x8xbf16>, vector<8x8xf32> -> vector<8x8xf32>
    %c0_9 = arith.constant 0 : index
    %c0_10 = arith.constant 0 : index
    %12 = vector.load %arg5[%c0_9, %c0_10] : memref<8x1xf32, #tpu.memory_space<vmem>>, vector<8x1xf32>
    %13 = vector.broadcast %12 : vector<8x1xf32> to vector<8x8xf32>
    %14 = arith.addf %11, %13 : vector<8x8xf32>
    %cst_11 = arith.constant 0.000000e+00 : f32
    %15 = vector.broadcast %cst_11 : f32 to vector<8x8xf32>
    %16 = arith.maximumf %14, %15 : vector<8x8xf32>
    %c0_12 = arith.constant 0 : index
    %c0_13 = arith.constant 0 : index
    %17 = vector.load %arg6[%c0_12, %c0_13] : memref<1x8xbf16, #tpu.memory_space<vmem>>, vector<1x8xbf16>
    %18 = arith.truncf %16 : vector<8x8xf32> to vector<8x8xbf16>
    %cst_14 = arith.constant dense<0.000000e+00> : vector<1x8xf32>
    %19 = tpu.matmul %17, %18, %cst_14 {dimension_numbers = #tpu.dot_dimension_numbers<[1], [0], [0], [1], [0, 0, 1, 1], [], []>} : vector<1x8xbf16>, vector<8x8xbf16>, vector<1x8xf32> -> vector<1x8xf32>
    %c0_15 = arith.constant 0 : index
    %c0_16 = arith.constant 0 : index
    %20 = vector.load %arg7[%c0_15, %c0_16] : memref<1x1xf32, #tpu.memory_space<vmem>>, vector<1x1xf32>
    %21 = vector.broadcast %20 : vector<1x1xf32> to vector<1x8xf32>
    %22 = arith.addf %19, %21 : vector<1x8xf32>
    %cst_17 = arith.constant 0.000000e+00 : f32
    %23 = vector.broadcast %cst_17 : f32 to vector<1x8xf32>
    %24 = arith.subf %23, %22 : vector<1x8xf32>
    %25 = math.exp %24 : vector<1x8xf32>
    %cst_18 = arith.constant 1.000000e+00 : f32
    %26 = vector.broadcast %cst_18 : f32 to vector<1x8xf32>
    %27 = arith.addf %26, %25 : vector<1x8xf32>
    %cst_19 = arith.constant 1.000000e+00 : f32
    %28 = vector.broadcast %cst_19 : f32 to vector<1x8xf32>
    %29 = arith.divf %28, %27 : vector<1x8xf32>
    %c0_20 = arith.constant 0 : index
    %c0_21 = arith.constant 0 : index
    %c0_22 = arith.constant 0 : index
    %30 = vector.load %arg8[%c0_20, %c0_21, %c0_22] : memref<1x1x8xf32, #tpu.memory_space<vmem>>, vector<1x1x8xf32>
    %31 = vector.shape_cast %30 : vector<1x1x8xf32> to vector<1x8xf32>
    %32 = vector.shape_cast %29 : vector<1x8xf32> to vector<1x1x8xf32>
    tpu.vector_store %arg8[%c0_20, %c0_21, %c0_22], %32 {strides = array<i32>} : memref<1x1x8xf32, #tpu.memory_space<vmem>>, vector<1x1x8xf32>,
    return
  }
  func.func @transform_0(%arg0: i32) -> (i32, i32) {
    %c0_i32 = arith.constant 0 : i32
    %c0_i32_0 = arith.constant 0 : i32
    return %arg0, %c0_i32 : i32, i32
  }
  func.func @transform_1(%arg0: i32) -> (i32, i32) {
    %c0_i32 = arith.constant 0 : i32
    %c0_i32_0 = arith.constant 0 : i32
    %c0_i32_1 = arith.constant 0 : i32
    return %c0_i32, %c0_i32_0 : i32, i32
  }
  func.func @transform_2(%arg0: i32) -> (i32, i32) {
    %c0_i32 = arith.constant 0 : i32
    %c0_i32_0 = arith.constant 0 : i32
    %c0_i32_1 = arith.constant 0 : i32
    return %c0_i32, %c0_i32_0 : i32, i32
  }
  func.func @transform_3(%arg0: i32) -> (i32, i32) {
    %c0_i32 = arith.constant 0 : i32
    %c0_i32_0 = arith.constant 0 : i32
    %c0_i32_1 = arith.constant 0 : i32
    return %c0_i32, %c0_i32_0 : i32, i32
  }
  func.func @transform_4(%arg0: i32) -> (i32, i32) {
    %c0_i32 = arith.constant 0 : i32
    %c0_i32_0 = arith.constant 0 : i32
    %c0_i32_1 = arith.constant 0 : i32
    return %c0_i32, %c0_i32_0 : i32, i32
  }
  func.func @transform_5(%arg0: i32) -> (i32, i32) {
    %c0_i32 = arith.constant 0 : i32
    %c0_i32_0 = arith.constant 0 : i32
    %c0_i32_1 = arith.constant 0 : i32
    return %c0_i32, %c0_i32_0 : i32, i32
  }
  func.func @transform_6(%arg0: i32) -> (i32, i32) {
    %c0_i32 = arith.constant 0 : i32
    %c0_i32_0 = arith.constant 0 : i32
    %c0_i32_1 = arith.constant 0 : i32
    return %c0_i32, %c0_i32_0 : i32, i32
  }
  func.func @transform_7(%arg0: i32) -> (i32, i32, i32) {
    %c0_i32 = arith.constant 0 : i32
    %c0_i32_0 = arith.constant 0 : i32
    %c0_i32_1 = arith.constant 0 : i32
    return %arg0, %c0_i32, %c0_i32_0 : i32, i32, i32
  }
}

</mosaic_0001>

<llo_original>
// kernel: supervised_net_forward.1
$region0: #{supervised_net_forward.1}
  #allocation0 [shape = 'u32[]', space=smem, size = 0x4, offset = 0x4, fixed_abs, tag = 'smem constant byte address 0x4 - core index']
  #allocation1 [shape = 'u32[144,128]{1,0:T(1,128)}', space=vmem, size = 0x12000, scoped, tag = 'internal scratch']
  #allocation2 [shape = 'f32[1,1]{1,0:T(1,128)S(1)}', space=vmem, size = 0x200, scoped, tag = 'scoped memory for supervised_net_forward.1']
  %s0 = inlined_call_operand.vmem [shape: f32[8,32], index: 0, kind: input, shape index: {}]
  %s1 = inlined_call_operand.vmem [shape: bf16[16,32], index: 1, kind: input, shape index: {}]
  %s2 = inlined_call_operand.vmem [shape: f32[16,1], index: 2, kind: input, shape index: {}]
  %s3 = inlined_call_operand.vmem [shape: bf16[8,16], index: 3, kind: input, shape index: {}]
  %s4 = inlined_call_operand.vmem [shape: f32[8,1], index: 4, kind: input, shape index: {}]
  %s5 = inlined_call_operand.vmem [shape: bf16[1,8], index: 5, kind: input, shape index: {}]
  %s6 = inlined_call_operand.<no memory space> [shape: f32[1,1], index: 6, kind: input, shape index: {}]
  %s7 = inlined_call_operand.hbm [shape: f32[1,1,8], index: 7, kind: output, shape index: {}]
  %s8 = sld [smem:[#allocation0]]
  $region38: #{supervised_net_forward.1} parent=0
    _
  %s10 = ssub.s32 1, %s8
  %s11 = scalar_select 0, %s10, %s8
  %v12 = vstv %s6
  %13 = vst [vmem:[#allocation2] sm:$0x1] %v12
  $region1: #{supervised_net_forward.1} parent=0
    #allocation3 [shape = 'u8[512]{0}', space=vmem, size = 0x400, scoped, tag = 'output window, operand 0, single buffered']
    #allocation4 [shape = 's32[1]{0}', space=sflag, size = 0x4, scoped, tag = 'scoped memory for supervised_net_forward.1']
    %14 = vsyncpa [#allocation4], 0
    // Predicated region
    $region2: #{supervised_net_forward.1} parent=1 // pred_check
      _
    $region3: #{supervised_net_forward.1} parent=1 // pred_check_branch
      %16 = sbr.rel (0) target = $region5
    $region4: #{supervised_net_forward.1} parent=1 // pred_region
      _
    $region5: #{supervised_net_forward.1} parent=1 // pred_fallthru
      _
    // Predicated region
    $region6: #{supervised_net_forward.1} parent=1 // pred_check
      _
    $region7: #{supervised_net_forward.1} parent=1 // pred_check_branch
      %18 = sbr.rel (0) target = $region9
    $region8: #{supervised_net_forward.1} parent=1 // pred_region
      _
    $region9: #{supervised_net_forward.1} parent=1 // pred_fallthru
      _
    // Predicated region
    $region10: #{supervised_net_forward.1} parent=1 // pred_check
      _
    $region11: #{supervised_net_forward.1} parent=1 // pred_check_branch
      %20 = sbr.rel (0) target = $region13
    $region12: #{supervised_net_forward.1} parent=1 // pred_region
      _
    $region13: #{supervised_net_forward.1} parent=1 // pred_fallthru
      _
    // Predicated region
    $region14: #{supervised_net_forward.1} parent=1 // pred_check
      _
    $region15: #{supervised_net_forward.1} parent=1 // pred_check_branch
      %22 = sbr.rel (0) target = $region17
    $region16: #{supervised_net_forward.1} parent=1 // pred_region
      _
    $region17: #{supervised_net_forward.1} parent=1 // pred_fallthru
      _
    // Predicated region
    $region18: #{supervised_net_forward.1} parent=1 // pred_check
      _
    $region19: #{supervised_net_forward.1} parent=1 // pred_check_branch
      %24 = sbr.rel (0) target = $region21
    $region20: #{supervised_net_forward.1} parent=1 // pred_region
      _
    $region21: #{supervised_net_forward.1} parent=1 // pred_fallthru
      _
    // Predicated region
    $region22: #{supervised_net_forward.1} parent=1 // pred_check
      _
    $region23: #{supervised_net_forward.1} parent=1 // pred_check_branch
      %26 = sbr.rel (0) target = $region25
    $region24: #{supervised_net_forward.1} parent=1 // pred_region
      _
    $region25: #{supervised_net_forward.1} parent=1 // pred_fallthru
      _
    // Predicated region
    $region26: #{supervised_net_forward.1} parent=1 // pred_check
      _
    $region27: #{supervised_net_forward.1} parent=1 // pred_check_branch
      %28 = sbr.rel (0) target = $region29
    $region28: #{supervised_net_forward.1} parent=1 // pred_region
      _
    $region29: #{supervised_net_forward.1} parent=1 // pred_fallthru
      _
    %v30 = vld [vmem:[%s0] sm:$0xff]
    %v31 = vpack.c.bf16 %v30, %v30
    %v32 = vld [vmem:[%s1] sm:$0xf]
    %v33 = vld [vmem:[%s1 + $0x4] sm:$0xf]
    %v34 = vld [vmem:[%s2] sm:$0xff]
    %v35 = vld [vmem:[%s2 + $0x8] sm:$0xff]
    %37 = vset.pattern.permute.xlu0 0
    %38 = vperm.xlu0 %37, %v34
    %v39 = vpop.permute.xlu0 %38
    %42 = vset.pattern.permute.xlu0 0
    %43 = vperm.xlu0 %42, %v35
    %v44 = vpop.permute.xlu0 %43
    %v48 = vunpack.c.l.b16 %v32
    %v49 = vunpack.c.l.b16 %v33
    %v50 = vpack.c.b16 %v49, %v48
    %vm51 = vcmask 261120
    %v53 = vsel %vm51, %v50, 0
    %v56 = vsel %vm51, %v31, 0
    %58 = vmatprep.subr.bf16.mxu0 0
    %59 = vmatpush1.bf16.xpose.msra.mxu0 %v56
    %60 = vmatprep.subr.bf16.mxu0 0
    %61 = vmatpush1.bf16.xpose.msra.mxu0 0
    %62 = vmatprep.subr.bf16.mxu0 0
    %63 = vmatpush1.bf16.xpose.msra.mxu0 0
    %64 = vmatprep.subr.bf16.mxu0 0
    %65 = vmatpush1.bf16.xpose.msra.mxu0 0
    %66 = vmatprep.subr.bf16.mxu0 0
    %67 = vmatpush1.bf16.xpose.msra.mxu0 0
    %68 = vmatprep.subr.bf16.mxu0 0
    %69 = vmatpush1.bf16.xpose.msra.mxu0 0
    %70 = vmatprep.subr.bf16.mxu0 0
    %71 = vmatpush1.bf16.xpose.msra.mxu0 0
    %72 = vmatprep.subr.bf16.mxu0 0
    %73 = vmatpush1.bf16.xpose.msra.mxu0 0
    %74 = vmatprep.subr.bf16.mxu0 0
    %75 = vmatpush1.bf16.xpose.msra.mxu0 0
    %76 = vmatprep.subr.bf16.mxu0 0
    %77 = vmatpush1.bf16.xpose.msra.mxu0 0
    %78 = vmatprep.subr.bf16.mxu0 0
    %79 = vmatpush1.bf16.xpose.msra.mxu0 0
    %80 = vmatprep.subr.bf16.mxu0 0
    %81 = vmatpush1.bf16.xpose.msra.mxu0 0
    %82 = vmatprep.subr.bf16.mxu0 0
    %83 = vmatpush1.bf16.xpose.msra.mxu0 0
    %84 = vmatprep.subr.bf16.mxu0 0
    %85 = vmatpush1.bf16.xpose.msra.mxu0 0
    %86 = vmatprep.subr.bf16.mxu0 0
    %87 = vmatpush1.bf16.xpose.msra.mxu0 0
    %88 = vmatprep.subr.bf16.mxu0 0
    %89 = vmatpush1.bf16.xpose.msra.mxu0 0
    %90 = vmatprep.mubr.bf16.mxu0 0
    %91 = vmatmul.mubr.bf16.gmra.mrb[0].mxu0 %v53
    %v92 = vpop.f32.mrb[0].mxu0
    %v93 = vadd.f32 %v39, %v92
    %v94 = vpop.f32.mrb[0].mxu0
    %v95 = vpop.f32.mrb[0].mxu0
    %v96 = vadd.f32 %v44, %v95
    %v97 = vpop.f32.mrb[0].mxu0
    %98 = vdwg.mxu0
    %v99 = vmax.f32 %v93, 0.0
    %v100 = vmax.f32 %v96, 0.0
    %v101 = vld [vmem:[%s3] sm:$0xf]
    %v102 = vpack.c.bf16 %v100, %v99
    %v103 = vld [vmem:[%s4] sm:$0xff]
    %105 = vset.pattern.permute.xlu0 0
    %106 = vperm.xlu0 %105, %v103
    %v107 = vpop.permute.xlu0 %106
    %vm109 = vcmask 130048
    %v111 = vsel %vm109, %v101, 0
    %113 = vmatprep.subr.bf16.mxu0 0
    %114 = vmatpush1.bf16.msra.mxu0 %v102
    %115 = vmatprep.subr.bf16.mxu0 0
    %116 = vmatpush1.bf16.msra.mxu0 0
    %117 = vmatprep.subr.bf16.mxu0 0
    %118 = vmatpush1.bf16.msra.mxu0 0
    %119 = vmatprep.subr.bf16.mxu0 0
    %120 = vmatpush1.bf16.msra.mxu0 0
    %121 = vmatprep.subr.bf16.mxu0 0
    %122 = vmatpush1.bf16.msra.mxu0 0
    %123 = vmatprep.subr.bf16.mxu0 0
    %124 = vmatpush1.bf16.msra.mxu0 0
    %125 = vmatprep.subr.bf16.mxu0 0
    %126 = vmatpush1.bf16.msra.mxu0 0
    %127 = vmatprep.subr.bf16.mxu0 0
    %128 = vmatpush1.bf16.msra.mxu0 0
    %129 = vmatprep.subr.bf16.mxu0 0
    %130 = vmatpush1.bf16.msra.mxu0 0
    %131 = vmatprep.subr.bf16.mxu0 0
    %132 = vmatpush1.bf16.msra.mxu0 0
    %133 = vmatprep.subr.bf16.mxu0 0
    %134 = vmatpush1.bf16.msra.mxu0 0
    %135 = vmatprep.subr.bf16.mxu0 0
    %136 = vmatpush1.bf16.msra.mxu0 0
    %137 = vmatprep.subr.bf16.mxu0 0
    %138 = vmatpush1.bf16.msra.mxu0 0
    %139 = vmatprep.subr.bf16.mxu0 0
    %140 = vmatpush1.bf16.msra.mxu0 0
    %141 = vmatprep.subr.bf16.mxu0 0
    %142 = vmatpush1.bf16.msra.mxu0 0
    %143 = vmatprep.subr.bf16.mxu0 0
    %144 = vmatpush1.bf16.msra.mxu0 0
    %145 = vmatprep.mubr.bf16.mxu0 0
    %146 = vmatmul.mubr.bf16.gmra.mrb[0].mxu0 %v111
    %v147 = vpop.f32.mrb[0].mxu0
    %v148 = vadd.f32 %v107, %v147
    %v149 = vpop.f32.mrb[0].mxu0
    %v150 = vpop.f32.mrb[0].mxu0
    %v151 = vpop.f32.mrb[0].mxu0
    %152 = vdwg.mxu0
    %v153 = vmax.f32 %v148, 0.0
    %v154 = vld [vmem:[%s5] sm:$0x1]
    %v155 = vpack.c.bf16 %v153, %v153
    %v156 = vld [vmem:[#allocation2] sm:$0x1]
    %158 = vset.pattern.permute.xlu0 0
    %159 = vperm.xlu0 %158, %v156
    %v160 = vpop.permute.xlu0 %159
    %v162 = vlaneseq
    %v163 = vshrl.u32 %v162, 7
    %v164 = vsub.s32 0, %v163
    %v165 = vrot.slane %v160, %v164
    %vm166 = vcmask 64512
    %v168 = vsel %vm166, %v154, 0
    %vm170 = vcmask 1043456
    %v172 = vsel %vm170, %v155, 0
    %174 = vmatprep.subr.bf16.mxu0 0
    %175 = vmatpush1.bf16.msra.mxu0 %v172
    %176 = vmatprep.subr.bf16.mxu0 0
    %177 = vmatpush1.bf16.msra.mxu0 0
    %178 = vmatprep.subr.bf16.mxu0 0
    %179 = vmatpush1.bf16.msra.mxu0 0
    %180 = vmatprep.subr.bf16.mxu0 0
    %181 = vmatpush1.bf16.msra.mxu0 0
    %182 = vmatprep.subr.bf16.mxu0 0
    %183 = vmatpush1.bf16.msra.mxu0 0
    %184 = vmatprep.subr.bf16.mxu0 0
    %185 = vmatpush1.bf16.msra.mxu0 0
    %186 = vmatprep.subr.bf16.mxu0 0
    %187 = vmatpush1.bf16.msra.mxu0 0
    %188 = vmatprep.subr.bf16.mxu0 0
    %189 = vmatpush1.bf16.msra.mxu0 0
    %190 = vmatprep.subr.bf16.mxu0 0
    %191 = vmatpush1.bf16.msra.mxu0 0
    %192 = vmatprep.subr.bf16.mxu0 0
    %193 = vmatpush1.bf16.msra.mxu0 0
    %194 = vmatprep.subr.bf16.mxu0 0
    %195 = vmatpush1.bf16.msra.mxu0 0
    %196 = vmatprep.subr.bf16.mxu0 0
    %197 = vmatpush1.bf16.msra.mxu0 0
    %198 = vmatprep.subr.bf16.mxu0 0
    %199 = vmatpush1.bf16.msra.mxu0 0
    %200 = vmatprep.subr.bf16.mxu0 0
    %201 = vmatpush1.bf16.msra.mxu0 0
    %202 = vmatprep.subr.bf16.mxu0 0
    %203 = vmatpush1.bf16.msra.mxu0 0
    %204 = vmatprep.subr.bf16.mxu0 0
    %205 = vmatpush1.bf16.msra.mxu0 0
    %206 = vmatprep.mubr.bf16.mxu0 0
    %207 = vmatmul.mubr.bf16.gmra.mrb[0].mxu0 %v168
    %v208 = vpop.f32.mrb[0].mxu0
    %v209 = vadd.f32 %v165, %v208
    %v210 = vpop.f32.mrb[0].mxu0
    %v211 = vpop.f32.mrb[0].mxu0
    %v212 = vpop.f32.mrb[0].mxu0
    %213 = vdwg.mxu0
    %v214 = vsub.f32 0.0, %v209
    %v215 = vmul.f32 %v214, 1.442695
    %v216 = vpow.pop %v215
    %v217 = vadd.f32 %v216, 1.0
    %v218 = vrcp.pop %v217
    %v219 = vmul.f32 1.0, %v218
    %vm220 = vcmask 57344
    %221 = vst.msk [vmem:[#allocation3] sm:$0x1] %vm220, %v219
    // Predicated region
    $region30: #{supervised_net_forward.1} parent=1 // pred_check
      _
    $region31: #{supervised_net_forward.1} parent=1 // pred_check_branch
      %223 = sbr.rel (0) target = $region33
    $region32: #{supervised_net_forward.1} parent=1 // pred_region
      %s225 = ssub.s32 16, 16
      %226 = vsyncadd [#allocation4], %s225
      %s228 = sshll.u32 [#allocation3], 4
      %s229 = int_to_ptr.vmem [resolvable:$true] %s228
      %231 = dma.vmem_to_hbm [thread:$0]  %s229, 16, %s7, [#allocation4]
    $region33: #{supervised_net_forward.1} parent=1 // pred_fallthru
      _
    // Predicated region
    $region34: #{supervised_net_forward.1} parent=1 // pred_check
      _
    $region35: #{supervised_net_forward.1} parent=1 // pred_check_branch
      %233 = sbr.rel (0) target = $region37
    $region36: #{supervised_net_forward.1} parent=1 // pred_region
      %234 = dma.done [#allocation4], 16
    $region37: #{supervised_net_forward.1} parent=1 // pred_fallthru
      _
    %235 = vsyncpa [#allocation4], 1

</llo_original>
